<compile_context>
chip_gen: v5e
topology: v5e:2x2
jax: 0.10.0
libtpu: 0.0.40
codegen_flags: <defaults>
</compile_context>

<pallas_src>
import functools
import math

import jax
import jax.numpy as jnp
import numpy as np
from jax.experimental import pallas as pl
from jax.experimental.pallas import tpu as pltpu

_LN_EPS = 1e-6
_NEG_INF = float(jnp.finfo(jnp.float32).min)


# ----------------------------- small helpers -------------------------------

def _pick_tile(dim, target, align):
    """Largest tile <= target that divides `dim` and is a multiple of `align`
    (falls back to the full dim, which is always a legal block size)."""
    if dim <= target:
        return dim
    t = (target // align) * align
    while t >= align:
        if dim % t == 0:
            return t
        t -= align
    return dim


def _compiler_params(semantics, est_bytes):
    # inputs/outputs are double buffered by the pipeline; leave headroom.
    # TODO(synk): re-derive the upper cap per generation (v7x has 64 MiB VMEM).
    limit = max(32 << 20, min(int(2.5 * est_bytes) + (2 << 20), 96 << 20))
    return pltpu.CompilerParams(dimension_semantics=semantics,
                                vmem_limit_bytes=limit)


def _gelu_tanh(x):
    # GELU(approximate='tanh'), same formula used in kernel and reference.
    return 0.5 * x * (1.0 + jnp.tanh(0.7978845608028654 * (x + 0.044715 * x * x * x)))


def rotate_half_matrix(d):
    """R such that (x @ R)[2i] = -x[2i+1] and (x @ R)[2i+1] = x[2i]."""
    R = np.zeros((d, d), np.float32)
    idx = np.arange(0, d, 2)
    R[idx + 1, idx] = -1.0
    R[idx, idx + 1] = 1.0
    return jnp.asarray(R)


def dit_rope(position_ids, rotary_dim=64, rope_theta=10000.0):
    """DitRotary.forward -> (cos, sin), each (S, rotary_dim)."""
    theta = 1.0 / rope_theta ** (
        jnp.arange(0, rotary_dim, 2, dtype=jnp.float32) / rotary_dim)
    pos = position_ids.astype(jnp.float32).reshape(-1, 1)
    idx_theta = pos * theta
    cos = jnp.cos(idx_theta)
    sin = jnp.sin(idx_theta)
    cos = jnp.stack((cos, cos), axis=-1).reshape(pos.shape[0], rotary_dim)
    sin = jnp.stack((sin, sin), axis=-1).reshape(pos.shape[0], rotary_dim)
    return cos, sin


# --------------------------- tiled matmul kernel ----------------------------

def _matmul_kernel(x_ref, w_ref, b_ref, o_ref, acc_ref, *, activation):
    @pl.when(pl.program_id(2) == 0)
    def _():
        acc_ref[...] = jnp.zeros(acc_ref.shape, jnp.float32)

    xb = x_ref[...]
    wb = w_ref[...]
    if xb.dtype != jnp.bfloat16:   # feed the MXU bf16 operands, accumulate f32
        xb = xb.astype(jnp.bfloat16)
    if wb.dtype != jnp.bfloat16:
        wb = wb.astype(jnp.bfloat16)
    acc_ref[...] += jnp.dot(xb, wb, preferred_element_type=jnp.float32)

    @pl.when(pl.program_id(2) == pl.num_programs(2) - 1)
    def _():
        out = acc_ref[...] + b_ref[...].astype(jnp.float32)
        if activation is not None:
            out = activation(out)
        o_ref[...] = out.astype(o_ref.dtype)


def fused_linear(x2d, w, b, *, out_dtype=None, activation=None,
                 tm=256, tn=256, tk=512):
    M, K = x2d.shape
    Kw, N = w.shape
    assert K == Kw
    out_dtype = out_dtype or x2d.dtype
    tm = _pick_tile(M, tm, 8)
    tn = _pick_tile(N, tn, 128)
    tk = _pick_tile(K, tk, 128)
    grid = (M // tm, N // tn, K // tk)
    est = (tm * tk * x2d.dtype.itemsize + tk * tn * w.dtype.itemsize
           + tn * 4 + tm * tn * jnp.dtype(out_dtype).itemsize) * 2 + tm * tn * 4
    return pl.pallas_call(
        functools.partial(_matmul_kernel, activation=activation),
        out_shape=jax.ShapeDtypeStruct((M, N), out_dtype),
        grid=grid,
        in_specs=[
            pl.BlockSpec((tm, tk), lambda i, j, k: (i, k)),
            pl.BlockSpec((tk, tn), lambda i, j, k: (k, j)),
            pl.BlockSpec((1, tn), lambda i, j, k: (0, j)),
        ],
        out_specs=pl.BlockSpec((tm, tn), lambda i, j, k: (i, j)),
        scratch_shapes=[pltpu.VMEM((tm, tn), jnp.float32)],
        compiler_params=_compiler_params(("parallel", "parallel", "arbitrary"), est),
    )(x2d, w, b.reshape(1, N))


# ------------------- AdaLayerNormZero modulation embedding ------------------

def _adaln_emb_kernel(t_ref, w_ref, b_ref, o_ref):
    t = t_ref[...].astype(jnp.float32)
    s = t * jax.nn.sigmoid(t)                                     # SiLU
    o_ref[...] = (jnp.dot(s, w_ref[...], preferred_element_type=jnp.float32)
                  + b_ref[...]).astype(o_ref.dtype)


def adaln_embedding(t, w, b):
    # Tiny (B x 6D) time-embedding matmul: single un-gridded call.
    B = t.shape[0]
    N = w.shape[1]
    return pl.pallas_call(
        _adaln_emb_kernel,
        out_shape=jax.ShapeDtypeStruct((B, N), jnp.float32),
    )(t, w, b.reshape(1, N))


# -------------------- fused LayerNorm / modulate / residual -----------------

def _ln_mod_kernel(x_ref, scale_ref, shift_ref, o_ref):
    x = x_ref[0].astype(jnp.float32)
    mu = jnp.mean(x, axis=-1, keepdims=True)
    xc = x - mu
    var = jnp.mean(xc * xc, axis=-1, keepdims=True)
    xn = xc * jax.lax.rsqrt(var + _LN_EPS)
    o_ref[0] = (xn * (1.0 + scale_ref[0]) + shift_ref[0]).astype(o_ref.dtype)


def ln_modulate(x, scale, shift, *, out_dtype=jnp.bfloat16, ts=256):
    B, S, D = x.shape
    ts = _pick_tile(S, ts, 8)
    est = ts * D * 4 * 4
    return pl.pallas_call(
        _ln_mod_kernel,
        out_shape=jax.ShapeDtypeStruct((B, S, D), out_dtype),
        grid=(B, S // ts),
        in_specs=[
            pl.BlockSpec((1, ts, D), lambda b, s: (b, s, 0)),
            pl.BlockSpec((1, 1, D), lambda b, s: (b, 0, 0)),
            pl.BlockSpec((1, 1, D), lambda b, s: (b, 0, 0)),
        ],
        out_specs=pl.BlockSpec((1, ts, D), lambda b, s: (b, s, 0)),
        compiler_params=_compiler_params(("parallel", "parallel"), est),
    )(x, scale, shift)


def _residual_ln_mod_kernel(x_ref, y_ref, gate_ref, scale_ref, shift_ref,
                            xo_ref, no_ref):
    xn = x_ref[0].astype(jnp.float32) + gate_ref[0] * y_ref[0].astype(jnp.float32)
    xo_ref[0] = xn.astype(xo_ref.dtype)
    mu = jnp.mean(xn, axis=-1, keepdims=True)
    xc = xn - mu
    var = jnp.mean(xc * xc, axis=-1, keepdims=True)
    nrm = xc * jax.lax.rsqrt(var + _LN_EPS)
    no_ref[0] = (nrm * (1.0 + scale_ref[0]) + shift_ref[0]).astype(no_ref.dtype)


def residual_ln_modulate(x, y, gate, scale, shift, *, norm_dtype=jnp.bfloat16, ts=256):
    B, S, D = x.shape
    ts = _pick_tile(S, ts, 8)
    spec = pl.BlockSpec((1, ts, D), lambda b, s: (b, s, 0))
    vspec = pl.BlockSpec((1, 1, D), lambda b, s: (b, 0, 0))
    est = ts * D * 4 * 8
    return pl.pallas_call(
        _residual_ln_mod_kernel,
        out_shape=(jax.ShapeDtypeStruct((B, S, D), x.dtype),
                   jax.ShapeDtypeStruct((B, S, D), norm_dtype)),
        grid=(B, S // ts),
        in_specs=[spec, spec, vspec, vspec, vspec],
        out_specs=(spec, spec),
        compiler_params=_compiler_params(("parallel", "parallel"), est),
    )(x, y, gate, scale, shift)


def _gate_residual_kernel(x_ref, y_ref, gate_ref, o_ref):
    o_ref[0] = (x_ref[0].astype(jnp.float32)
                + gate_ref[0] * y_ref[0].astype(jnp.float32)).astype(o_ref.dtype)


def gate_residual(x, y, gate, *, ts=256):
    B, S, D = x.shape
    ts = _pick_tile(S, ts, 8)
    spec = pl.BlockSpec((1, ts, D), lambda b, s: (b, s, 0))
    vspec = pl.BlockSpec((1, 1, D), lambda b, s: (b, 0, 0))
    est = ts * D * 4 * 6
    return pl.pallas_call(
        _gate_residual_kernel,
        out_shape=jax.ShapeDtypeStruct((B, S, D), x.dtype),
        grid=(B, S // ts),
        in_specs=[spec, spec, vspec],
        out_specs=spec,
        compiler_params=_compiler_params(("parallel", "parallel"), est),
    )(x, y, gate)


# ------------------------ flash attention (KV-tiled) ------------------------

def _flash_attn_kernel(q_ref, k_ref, v_ref, bd_ref, cosq_ref, sinq_ref,
                       cosk_ref, sink_ref, rotm_ref, o_ref,
                       m_scr, l_scr, acc_scr, q0_scr, *,
                       heads, head_dim, look_ahead, look_backward, sm_scale):
    ki = pl.program_id(2)
    d = head_dim

    @pl.when(ki == 0)
    def _init():
        m_scr[...] = jnp.full(m_scr.shape, -jnp.inf, jnp.float32)
        l_scr[...] = jnp.zeros(l_scr.shape, jnp.float32)
        acc_scr[...] = jnp.zeros(acc_scr.shape, jnp.float32)
        # RoPE is applied to head 0 only (query[:, :, :1, :] in PyTorch);
        # cache the roped q tile once per (batch, q-tile).
        q0 = q_ref[0, :, 0:d].astype(jnp.float32)
        q0_scr[...] = (q0 * cosq_ref[...]
                       + jnp.dot(q0, rotm_ref[...],
                                 preferred_element_type=jnp.float32) * sinq_ref[...])

    # Additive mask bias built in-kernel from the compact bf16 block_diff tile.
    bd = bd_ref[0].astype(jnp.float32)
    keep = jnp.logical_and(bd >= -look_backward, bd <= look_ahead)
    bias = jnp.where(keep, 0.0, _NEG_INF)

    # RoPE on key head 0 for this KV tile.
    k0 = k_ref[0, :, 0:d].astype(jnp.float32)
    k0 = (k0 * cosk_ref[...]
          + jnp.dot(k0, rotm_ref[...], preferred_element_type=jnp.float32)
          * sink_ref[...])

    # Static per-head loop: heads > 0 never pay the RoPE cost.
    for h in range(heads):
        if h == 0:
            qh = q0_scr[...]
            kh = k0
        else:
            qh = q_ref[0, :, h * d:(h + 1) * d]
            kh = k_ref[0, :, h * d:(h + 1) * d]
        vh = v_ref[0, :, h * d:(h + 1) * d]

        s = jnp.dot(qh, kh.T, preferred_element_type=jnp.float32) * sm_scale + bias
        m_prev = m_scr[h]
        l_prev = l_scr[h]
        m_new = jnp.maximum(m_prev, jnp.max(s, axis=-1, keepdims=True))
        alpha = jnp.exp(m_prev - m_new)
        p = jnp.exp(s - m_new)
        l_scr[h] = alpha * l_prev + jnp.sum(p, axis=-1, keepdims=True)
        acc_scr[h] = alpha * acc_scr[h] + jnp.dot(
            p.astype(vh.dtype), vh, preferred_element_type=jnp.float32)
        m_scr[h] = m_new

    @pl.when(ki == pl.num_programs(2) - 1)
    def _finalize():
        for h in range(heads):
            inv = pl.reciprocal(l_scr[h], approx=True)
            o_ref[0, :, h * d:(h + 1) * d] = (acc_scr[h] * inv).astype(o_ref.dtype)


def flash_attention(qkv, cos, sin, rotm, block_diff, *, heads, head_dim,
                    look_ahead, look_backward, tq=256, tkv=512):
    B, S, three_inner = qkv.shape
    inner = heads * head_dim
    assert three_inner == 3 * inner
    assert inner % 128 == 0, "heads*head_dim must be a multiple of 128"
    tq = _pick_tile(S, tq, 8)
    tkv = _pick_tile(S, tkv, 128)
    grid = (B, S // tq, S // tkv)
    dt = qkv.dtype.itemsize
    est = ((tq * inner * dt) + 2 * (tkv * inner * dt)
           + tq * tkv * block_diff.dtype.itemsize
           + 2 * (tq + tkv) * head_dim * 4 + head_dim * head_dim * 4
           + tq * inner * dt) * 2 + heads * tq * (head_dim + 2) * 4 + tq * head_dim * 4

    kern = functools.partial(
        _flash_attn_kernel, heads=heads, head_dim=head_dim,
        look_ahead=float(look_ahead), look_backward=float(look_backward),
        sm_scale=1.0 / math.sqrt(head_dim))

    return pl.pallas_call(
        kern,
        out_shape=jax.ShapeDtypeStruct((B, S, inner), qkv.dtype),
        grid=grid,
        in_specs=[
            pl.BlockSpec((1, tq, inner), lambda b, qi, ki: (b, qi, 0)),    # Q columns
            pl.BlockSpec((1, tkv, inner), lambda b, qi, ki: (b, ki, 1)),   # K columns
            pl.BlockSpec((1, tkv, inner), lambda b, qi, ki: (b, ki, 2)),   # V columns
            pl.BlockSpec((1, tq, tkv), lambda b, qi, ki: (b, qi, ki)),     # block_diff
            pl.BlockSpec((tq, head_dim), lambda b, qi, ki: (qi, 0)),       # cos (q rows)
            pl.BlockSpec((tq, head_dim), lambda b, qi, ki: (qi, 0)),       # sin (q rows)
            pl.BlockSpec((tkv, head_dim), lambda b, qi, ki: (ki, 0)),      # cos (k rows)
            pl.BlockSpec((tkv, head_dim), lambda b, qi, ki: (ki, 0)),      # sin (k rows)
            pl.BlockSpec((head_dim, head_dim), lambda b, qi, ki: (0, 0)),  # rotate-half R
        ],
        out_specs=pl.BlockSpec((1, tq, inner), lambda b, qi, ki: (b, qi, 0)),
        scratch_shapes=[
            pltpu.VMEM((heads, tq, 1), jnp.float32),          # running max
            pltpu.VMEM((heads, tq, 1), jnp.float32),          # running sum
            pltpu.VMEM((heads, tq, head_dim), jnp.float32),   # accumulator
            pltpu.VMEM((tq, head_dim), jnp.float32),          # roped q head-0
        ],
        compiler_params=_compiler_params(("parallel", "parallel", "arbitrary"), est),
    )(qkv, qkv, qkv, block_diff, cos, sin, cos, sin, rotm)


# --------------------------------- DiTBlock ---------------------------------

class DiTBlockPallas:
    """Pallas-TPU forward of the PyTorch DiTBlock (inference; dropout = identity)."""

    def __init__(self, key, dim, heads, head_dim=64, ff_mult=2,
                 look_ahead_block=0.0, look_backward_block=1.0,
                 proj_tm=256, proj_tn=256, proj_tk=512,
                 attn_tq=256, attn_tkv=512):
        assert head_dim == 64, "DitRotary.rotary_dim == 64 -> head_dim must be 64"
        inner = heads * head_dim
        assert inner % 128 == 0, "heads*head_dim must be a multiple of 128"
        self.dim = dim
        self.heads = heads
        self.head_dim = head_dim
        self.inner_dim = inner
        self.ff_dim = dim * ff_mult
        self.look_ahead = float(look_ahead_block)
        self.look_backward = float(look_backward_block)
        self.proj_tiles = (proj_tm, proj_tn, proj_tk)
        self.attn_tiles = (attn_tq, attn_tkv)

        ks = jax.random.split(key, 10)
        s = 0.02
        f32, bf16 = jnp.float32, jnp.bfloat16

        def w(k, shape, dtype):  # weights stored (in, out); matmul weights in bf16
            return (jax.random.normal(k, shape, f32) * s).astype(dtype)

        # AdaLayerNormZero modulation (f32: tiny, feeds gates / scales / shifts)
        self.w_mod = w(ks[0], (dim, 6 * dim), f32)
        self.b_mod = jax.random.normal(ks[1], (6 * dim,), f32) * s
        # fused Q/K/V projection
        self.w_qkv = w(ks[2], (dim, 3 * inner), bf16)
        self.b_qkv = jax.random.normal(ks[3], (3 * inner,), f32) * s
        # attention output projection (to_out[0])
        self.w_o = w(ks[4], (inner, dim), bf16)
        self.b_o = jax.random.normal(ks[5], (dim,), f32) * s
        # feed-forward (Linear -> GELU(tanh) -> Linear)
        self.w_ff1 = w(ks[6], (dim, self.ff_dim), bf16)
        self.b_ff1 = jax.random.normal(ks[7], (self.ff_dim,), f32) * s
        self.w_ff2 = w(ks[8], (self.ff_dim, dim), bf16)
        self.b_ff2 = jax.random.normal(ks[9], (dim,), f32) * s
        self.rotm = rotate_half_matrix(head_dim)

    def __call__(self, x, t, rope, block_diff):
        B, S, D = x.shape
        H, d, inner = self.heads, self.head_dim, self.inner_dim
        cos, sin = rope
        tm, tn, tk = self.proj_tiles
        tq, tkv = self.attn_tiles

        # --- AdaLayerNormZero modulation parameters from the time embedding ---
        emb = adaln_embedding(t, self.w_mod, self.b_mod)              # (B, 6D) f32
        # tiny chunk/reshape glue on a (B, 6D) tensor (plain jnp)
        shift_msa, scale_msa, gate_msa, shift_mlp, scale_mlp, gate_mlp = [
            emb[:, i * D:(i + 1) * D].reshape(B, 1, D) for i in range(6)]

        norm1 = ln_modulate(x, scale_msa, shift_msa)                  # (B,S,D) bf16

        # --- attention: fused QKV -> flash attention -> output projection ---
        qkv = fused_linear(norm1.reshape(B * S, D), self.w_qkv, self.b_qkv,
                           out_dtype=jnp.bfloat16, tm=tm, tn=tn, tk=tk)
        qkv = qkv.reshape(B, S, 3 * inner)

        bd = jnp.broadcast_to(
            block_diff.astype(jnp.float32).reshape(block_diff.shape[0], S, S),
            (B, S, S)).astype(jnp.bfloat16)

        attn = flash_attention(qkv, cos, sin, self.rotm, bd,
                               heads=H, head_dim=d,
                               look_ahead=self.look_ahead,
                               look_backward=self.look_backward,
                               tq=tq, tkv=tkv)                        # (B,S,inner) bf16

        attn_out = fused_linear(attn.reshape(B * S, inner), self.w_o, self.b_o,
                                out_dtype=jnp.float32, tm=tm, tn=tn, tk=tk)
        attn_out = attn_out.reshape(B, S, D)

        # --- MSA residual fused with the FF LayerNorm + modulation ---
        x1, norm2 = residual_ln_modulate(x, attn_out, gate_msa, scale_mlp, shift_mlp)

        # --- feed-forward (GELU fused into the first matmul's epilogue) ---
        h1 = fused_linear(norm2.reshape(B * S, D), self.w_ff1, self.b_ff1,
                          out_dtype=jnp.bfloat16, activation=_gelu_tanh,
                          tm=tm, tn=tn, tk=tk)
        ff_out = fused_linear(h1, self.w_ff2, self.b_ff2,
                              out_dtype=jnp.float32, tm=tm, tn=tn, tk=tk)
        ff_out = ff_out.reshape(B, S, D)

        return gate_residual(x1, ff_out, gate_mlp)


# --------------------------------- reference --------------------------------

def reference_forward(m, x, t, cos, sin, block_diff):
    f32 = jnp.float32
    B, S, D = x.shape
    H, d, inner = m.heads, m.head_dim, m.inner_dim
    w_qkv = m.w_qkv.astype(f32)
    w_o = m.w_o.astype(f32)
    w_ff1 = m.w_ff1.astype(f32)
    w_ff2 = m.w_ff2.astype(f32)

    def ln(u):
        mu = jnp.mean(u, axis=-1, keepdims=True)
        var = jnp.mean((u - mu) ** 2, axis=-1, keepdims=True)
        return (u - mu) * jax.lax.rsqrt(var + _LN_EPS)

    emb = jnp.dot(jax.nn.silu(t), m.w_mod) + m.b_mod
    shift_msa, scale_msa, gate_msa, shift_mlp, scale_mlp, gate_mlp = jnp.split(emb, 6, axis=-1)

    norm = ln(x) * (1.0 + scale_msa[:, None, :]) + shift_msa[:, None, :]

    qkv = jnp.dot(norm, w_qkv) + m.b_qkv
    q, k, v = qkv[..., :inner], qkv[..., inner:2 * inner], qkv[..., 2 * inner:]
    q = q.reshape(B, S, H, d)
    k = k.reshape(B, S, H, d)
    v = v.reshape(B, S, H, d)

    def apply_rope(u):                      # u: (B, S, 1, d)
        ur = u.reshape(B, S, 1, d // 2, 2)
        u1, u2 = ur[..., 0], ur[..., 1]
        rot = jnp.stack((-u2, u1), axis=-1).reshape(B, S, 1, d)
        return u * cos[None, :, None, :] + rot * sin[None, :, None, :]

    q = jnp.concatenate([apply_rope(q[:, :, :1, :]), q[:, :, 1:, :]], axis=2)
    k = jnp.concatenate([apply_rope(k[:, :, :1, :]), k[:, :, 1:, :]], axis=2)

    mask = (block_diff >= -m.look_backward) & (block_diff <= m.look_ahead)
    qh = jnp.transpose(q, (0, 2, 1, 3))
    kh = jnp.transpose(k, (0, 2, 1, 3))
    vh = jnp.transpose(v, (0, 2, 1, 3))
    attn = jnp.einsum('bhqd,bhkd->bhqk', qh, kh) / math.sqrt(d)
    attn = attn + jnp.where(mask, 0.0, _NEG_INF)
    attn = jax.nn.softmax(attn, axis=-1)
    o = jnp.einsum('bhqk,bhkd->bhqd', attn, vh)
    o = jnp.transpose(o, (0, 2, 1, 3)).reshape(B, S, inner)
    attn_out = jnp.dot(o, w_o) + m.b_o

    x = x + gate_msa[:, None, :] * attn_out
    norm2 = ln(x) * (1.0 + scale_mlp[:, None, :]) + shift_mlp[:, None, :]
    ff = jnp.dot(_gelu_tanh(jnp.dot(norm2, w_ff1) + m.b_ff1), w_ff2) + m.b_ff2
    x = x + gate_mlp[:, None, :] * ff
    return x


# ----------------------------------- main ------------------------------------

if __name__ == "__main__":
    # Small but tiling-exercising shapes: head_dim is pinned to 64 by DitRotary,
    # heads=2 -> inner_dim=128; S=256 with 128-wide tiles exercises the flash
    # KV loop and the K-accumulation of the tiled matmuls.
    B, S = 2, 256
    dim, heads, head_dim = 256, 2, 64
    ff_mult = 2
    look_backward, look_ahead = 1.0, 0.0

    key = jax.random.PRNGKey(0)
    kx, kt, kp = jax.random.split(key, 3)
    x = jax.random.normal(kx, (B, S, dim), jnp.float32)
    t = jax.random.normal(kt, (B, dim), jnp.float32)

    block = DiTBlockPallas(kp, dim, heads, head_dim, ff_mult=ff_mult,
                           look_ahead_block=look_ahead,
                           look_backward_block=look_backward,
                           proj_tm=256, proj_tn=128, proj_tk=128,
                           attn_tq=128, attn_tkv=128)

    cos, sin = dit_rope(jnp.arange(S))

    # block_diff: difference of chunk indices (key chunk - query chunk),
    # shaped (B, 1, S, S) like the PyTorch module expects.
    chunk = jnp.arange(S) // 32
    block_diff = (chunk[None, :] - chunk[:, None]).astype(jnp.float32)
    block_diff = jnp.broadcast_to(block_diff[None, None], (B, 1, S, S))

    out = block(x, t, (cos, sin), block_diff)
    out = jax.block_until_ready(out)
    assert out.shape == (B, S, dim)

    ref = reference_forward(block, x, t, cos, sin, block_diff)
    np.testing.assert_allclose(np.asarray(out), np.asarray(ref),
                               atol=2e-2, rtol=2e-2)
    print("KERNEL_OK")
</pallas_src>

<mosaic_0001>
module attributes {stable_mosaic.version = 11 : i64} {
  func.func @_adaln_emb_kernel(%arg0: memref<2x256xf32, #tpu.memory_space<vmem>>, %arg1: memref<256x1536xf32, #tpu.memory_space<vmem>>, %arg2: memref<1x1536xf32, #tpu.memory_space<vmem>>, %arg3: memref<2x1536xf32, #tpu.memory_space<vmem>>) attributes {dimension_semantics = [], scalar_prefetch = 0 : i64, scratch_operands = 0 : i64, tpu.core_type = #tpu.core_type<tc>} {
    %c0 = arith.constant 0 : index
    %c0_0 = arith.constant 0 : index
    %0 = vector.load %arg0[%c0, %c0_0] : memref<2x256xf32, #tpu.memory_space<vmem>>, vector<2x256xf32>
    %1 = arith.negf %0 : vector<2x256xf32>
    %2 = math.exp %1 : vector<2x256xf32>
    %cst = arith.constant 1.000000e+00 : f32
    %3 = vector.broadcast %cst : f32 to vector<2x256xf32>
    %4 = arith.addf %3, %2 : vector<2x256xf32>
    %5 = arith.divf %3, %4 : vector<2x256xf32>
    %6 = arith.mulf %0, %5 : vector<2x256xf32>
    %c0_1 = arith.constant 0 : index
    %c0_2 = arith.constant 0 : index
    %7 = vector.load %arg1[%c0_1, %c0_2] : memref<256x1536xf32, #tpu.memory_space<vmem>>, vector<256x1536xf32>
    %cst_3 = arith.constant dense<0.000000e+00> : vector<2x1536xf32>
    %8 = tpu.matmul %6, %7, %cst_3 {dimension_numbers = #tpu.dot_dimension_numbers<[1], [0], [0], [1], [0, 0, 1, 1], [], []>} : vector<2x256xf32>, vector<256x1536xf32>, vector<2x1536xf32> -> vector<2x1536xf32>
    %c0_4 = arith.constant 0 : index
    %c0_5 = arith.constant 0 : index
    %9 = vector.load %arg2[%c0_4, %c0_5] : memref<1x1536xf32, #tpu.memory_space<vmem>>, vector<1x1536xf32>
    %10 = vector.broadcast %9 : vector<1x1536xf32> to vector<2x1536xf32>
    %11 = arith.addf %8, %10 : vector<2x1536xf32>
    %c0_6 = arith.constant 0 : index
    %c0_7 = arith.constant 0 : index
    %12 = vector.load %arg3[%c0_6, %c0_7] : memref<2x1536xf32, #tpu.memory_space<vmem>>, vector<2x1536xf32>
    tpu.vector_store %arg3[%c0_6, %c0_7], %11 {strides = array<i32>} : memref<2x1536xf32, #tpu.memory_space<vmem>>, vector<2x1536xf32>,
    return
  }
}

</mosaic_0001>

<llo_original>
// kernel: tpu_custom_call.1
$region0: #{tpu_custom_call.1}
  #allocation0 [shape = 'u32[]', space=smem, size = 0x4, offset = 0x4, fixed_abs, tag = 'smem constant byte address 0x4 - core index']
  #allocation1 [shape = 'u32[72,128]{1,0:T(1,128)}', space=vmem, size = 0x9000, scoped, tag = 'internal scratch']
  %s0 = inlined_call_operand.hbm [shape: f32[2,256], index: 0, kind: input, shape index: {}]
  %s1 = inlined_call_operand.hbm [shape: f32[256,1536], index: 1, kind: input, shape index: {}]
  %s2 = inlined_call_operand.hbm [shape: f32[1,1536], index: 2, kind: input, shape index: {}]
  %s3 = inlined_call_operand.hbm [shape: f32[2,1536], index: 3, kind: output, shape index: {}]
  %s4 = sld [smem:[#allocation0]]
  $region34: #{tpu_custom_call.1} parent=0
    _
  %s6 = ssub.s32 1, %s4
  %s7 = scalar_select 0, %s6, %s4
  $region1: #{tpu_custom_call.1} parent=0
    #allocation2 [shape = 'u8[2048]{0}', space=vmem, size = 0x800, scoped, tag = 'input window, operand 0, single buffered']
    #allocation3 [shape = 's32[1]{0}', space=sflag, size = 0x4, scoped, tag = 'scoped memory for tpu_custom_call.1']
    #allocation4 [shape = 's32[1]{0}', space=sflag, size = 0x4, scoped, tag = 'scoped memory for tpu_custom_call.1']
    #allocation5 [shape = 'u8[1572864]{0}', space=vmem, size = 0x180000, scoped, tag = 'input window, operand 1, single buffered']
    #allocation6 [shape = 's32[1]{0}', space=sflag, size = 0x4, scoped, tag = 'scoped memory for tpu_custom_call.1']
    #allocation7 [shape = 'u8[6144]{0}', space=vmem, size = 0x1800, scoped, tag = 'input window, operand 2, single buffered']
    #allocation8 [shape = 'u8[12288]{0}', space=vmem, size = 0x3000, scoped, tag = 'output window, operand 0, single buffered']
    %8 = vsyncpa [#allocation3], 0
    %9 = vsyncpa [#allocation6], 0
    %10 = vsyncpa [#allocation4], 0
    // Predicated region
    $region2: #{tpu_custom_call.1} parent=1 // pred_check
      _
    $region3: #{tpu_custom_call.1} parent=1 // pred_check_branch
      %12 = sbr.rel (0) target = $region5
    $region4: #{tpu_custom_call.1} parent=1 // pred_region
      %14 = vsyncadd [#allocation3], 0
      %s16 = sshll.u32 %s0, 4
      %s17 = int_to_ptr.hbm [resolvable:$true] %s16
      %s18 = sshll.u32 [#allocation2], 4
      %s19 = int_to_ptr.vmem [resolvable:$true] %s18
      %21 = dma.hbm_to_vmem [thread:$0]  %s17, 64, %s19, [#allocation3]
    $region5: #{tpu_custom_call.1} parent=1 // pred_fallthru
      _
    // Predicated region
    $region6: #{tpu_custom_call.1} parent=1 // pred_check
      _
    $region7: #{tpu_custom_call.1} parent=1 // pred_check_branch
      %23 = sbr.rel (0) target = $region9
    $region8: #{tpu_custom_call.1} parent=1 // pred_region
      %25 = vsyncadd [#allocation6], 0
      %s26 = sshll.u32 %s1, 4
      %s27 = int_to_ptr.hbm [resolvable:$true] %s26
      %s28 = sshll.u32 [#allocation5], 4
      %s29 = int_to_ptr.vmem [resolvable:$true] %s28
      %34 = dma.hbm_to_vmem [thread:$0]  %s27, 49152, %s29, [#allocation6], 1536, 1536, 96
    $region9: #{tpu_custom_call.1} parent=1 // pred_fallthru
      _
    // Predicated region
    $region10: #{tpu_custom_call.1} parent=1 // pred_check
      _
    $region11: #{tpu_custom_call.1} parent=1 // pred_check_branch
      %36 = sbr.rel (0) target = $region13
    $region12: #{tpu_custom_call.1} parent=1 // pred_region
      %38 = vsyncadd [#allocation6], 0
      %s40 = sshll.u32 %s2, 4
      %s41 = int_to_ptr.hbm [resolvable:$true] %s40
      %s42 = sshll.u32 [#allocation7], 4
      %s43 = int_to_ptr.vmem [resolvable:$true] %s42
      %45 = dma.hbm_to_vmem [thread:$0]  %s41, 192, %s43, [#allocation6]
    $region13: #{tpu_custom_call.1} parent=1 // pred_fallthru
      _
    // Predicated region
    $region14: #{tpu_custom_call.1} parent=1 // pred_check
      _
    $region15: #{tpu_custom_call.1} parent=1 // pred_check_branch
      %47 = sbr.rel (0) target = $region17
    $region16: #{tpu_custom_call.1} parent=1 // pred_region
      %49 = dma.done [#allocation3], 64
    $region17: #{tpu_custom_call.1} parent=1 // pred_fallthru
      _
    // Predicated region
    $region18: #{tpu_custom_call.1} parent=1 // pred_check
      _
    $region19: #{tpu_custom_call.1} parent=1 // pred_check_branch
      %51 = sbr.rel (0) target = $region21
    $region20: #{tpu_custom_call.1} parent=1 // pred_region
      %53 = dma.done [#allocation6], 49152
    $region21: #{tpu_custom_call.1} parent=1 // pred_fallthru
      _
    // Predicated region
    $region22: #{tpu_custom_call.1} parent=1 // pred_check
      _
    $region23: #{tpu_custom_call.1} parent=1 // pred_check_branch
      %55 = sbr.rel (0) target = $region25
    $region24: #{tpu_custom_call.1} parent=1 // pred_region
      %57 = dma.done [#allocation6], 192
    $region25: #{tpu_custom_call.1} parent=1 // pred_fallthru
      _
    %v58 = vld [vmem:[#allocation2] sm:$0xf]
    %v59 = vxor.u32 %v58, 2147483648
    %v60 = vmul.f32 %v59, 1.442695
    %v61 = vpow.pop %v60
    %v62 = vadd.f32 %v61, 1.0
    %v63 = vrcp.pop %v62
    %v64 = vmul.f32 %v62, %v63
    %v65 = vsub.f32 1.0, %v64
    %v66 = vmul.f32 %v63, %v65
    %v67 = vadd.f32 %v63, %v66
    %vm68 = vweird.f32 %v62
    %vm69 = vweird.f32 %v63
    %vm70 = vmor %vm68, %vm69
    %v71 = vsel %vm70, %v63, %v67
    %v72 = vand.u32 2147483647, %v62
    %vm73 = vcmp.eq.f32.partialorder %v72, 8.507059e+37
    %v74 = vand.u32 %v62, 2147483648
    %v75 = vor.u32 1.1754944e-38, %v74
    %v76 = vsel %vm73, %v75, %v71
    %v77 = vmul.f32 1.0, %v76
    %v78 = vmul.f32 %v58, %v77
    %v79 = vld [vmem:[#allocation5] sm:$0xff]
    %v80 = vld [vmem:[#allocation5 + $0x8] sm:$0xff]
    %v81 = vld [vmem:[#allocation5 + $0x10] sm:$0xff]
    %v82 = vld [vmem:[#allocation5 + $0x18] sm:$0xff]
    %v83 = vld [vmem:[#allocation5 + $0x20] sm:$0xff]
    %v84 = vld [vmem:[#allocation5 + $0x28] sm:$0xff]
    %v85 = vld [vmem:[#allocation5 + $0x30] sm:$0xff]
    %v86 = vld [vmem:[#allocation5 + $0x38] sm:$0xff]
    %v87 = vld [vmem:[#allocation5 + $0x40] sm:$0xff]
    %v88 = vld [vmem:[#allocation5 + $0x48] sm:$0xff]
    %v89 = vld [vmem:[#allocation5 + $0x50] sm:$0xff]
    %v90 = vld [vmem:[#allocation5 + $0x58] sm:$0xff]
    %v91 = vld [vmem:[#allocation5 + $0x60] sm:$0xff]
    %v92 = vld [vmem:[#allocation5 + $0x68] sm:$0xff]
    %v93 = vld [vmem:[#allocation5 + $0x70] sm:$0xff]
    %v94 = vld [vmem:[#allocation5 + $0x78] sm:$0xff]
    %v95 = vld [vmem:[#allocation5 + $0x80] sm:$0xff]
    %v96 = vld [vmem:[#allocation5 + $0x88] sm:$0xff]
    %v97 = vld [vmem:[#allocation5 + $0x90] sm:$0xff]
    %v98 = vld [vmem:[#allocation5 + $0x98] sm:$0xff]
    %v99 = vld [vmem:[#allocation5 + $0xa0] sm:$0xff]
    %v100 = vld [vmem:[#allocation5 + $0xa8] sm:$0xff]
    %v101 = vld [vmem:[#allocation5 + $0xb0] sm:$0xff]
    %v102 = vld [vmem:[#allocation5 + $0xb8] sm:$0xff]
    %v103 = vld [vmem:[#allocation5 + $0xc0] sm:$0xff]
    %v104 = vld [vmem:[#allocation5 + $0xc8] sm:$0xff]
    %v105 = vld [vmem:[#allocation5 + $0xd0] sm:$0xff]
    %v106 = vld [vmem:[#allocation5 + $0xd8] sm:$0xff]
    %v107 = vld [vmem:[#allocation5 + $0xe0] sm:$0xff]
    %v108 = vld [vmem:[#allocation5 + $0xe8] sm:$0xff]
    %v109 = vld [vmem:[#allocation5 + $0xf0] sm:$0xff]
    %v110 = vld [vmem:[#allocation5 + $0xf8] sm:$0xff]
    %v111 = vld [vmem:[#allocation5 + $0x100] sm:$0xff]
    %v112 = vld [vmem:[#allocation5 + $0x108] sm:$0xff]
    %v113 = vld [vmem:[#allocation5 + $0x110] sm:$0xff]
    %v114 = vld [vmem:[#allocation5 + $0x118] sm:$0xff]
    %v115 = vld [vmem:[#allocation5 + $0x120] sm:$0xff]
    %v116 = vld [vmem:[#allocation5 + $0x128] sm:$0xff]
    %v117 = vld [vmem:[#allocation5 + $0x130] sm:$0xff]
    %v118 = vld [vmem:[#allocation5 + $0x138] sm:$0xff]
    %v119 = vld [vmem:[#allocation5 + $0x140] sm:$0xff]
    %v120 = vld [vmem:[#allocation5 + $0x148] sm:$0xff]
    %v121 = vld [vmem:[#allocation5 + $0x150] sm:$0xff]
    %v122 = vld [vmem:[#allocation5 + $0x158] sm:$0xff]
    %v123 = vld [vmem:[#allocation5 + $0x160] sm:$0xff]
    %v124 = vld [vmem:[#allocation5 + $0x168] sm:$0xff]
    %v125 = vld [vmem:[#allocation5 + $0x170] sm:$0xff]
    %v126 = vld [vmem:[#allocation5 + $0x178] sm:$0xff]
    %v127 = vld [vmem:[#allocation5 + $0x180] sm:$0xff]
    %v128 = vld [vmem:[#allocation5 + $0x188] sm:$0xff]
    %v129 = vld [vmem:[#allocation5 + $0x190] sm:$0xff]
    %v130 = vld [vmem:[#allocation5 + $0x198] sm:$0xff]
    %v131 = vld [vmem:[#allocation5 + $0x1a0] sm:$0xff]
    %v132 = vld [vmem:[#allocation5 + $0x1a8] sm:$0xff]
    %v133 = vld [vmem:[#allocation5 + $0x1b0] sm:$0xff]
    %v134 = vld [vmem:[#allocation5 + $0x1b8] sm:$0xff]
    %v135 = vld [vmem:[#allocation5 + $0x1c0] sm:$0xff]
    %v136 = vld [vmem:[#allocation5 + $0x1c8] sm:$0xff]
    %v137 = vld [vmem:[#allocation5 + $0x1d0] sm:$0xff]
    %v138 = vld [vmem:[#allocation5 + $0x1d8] sm:$0xff]
    %v139 = vld [vmem:[#allocation5 + $0x1e0] sm:$0xff]
    %v140 = vld [vmem:[#allocation5 + $0x1e8] sm:$0xff]
    %v141 = vld [vmem:[#allocation5 + $0x1f0] sm:$0xff]
    %v142 = vld [vmem:[#allocation5 + $0x1f8] sm:$0xff]
    %v143 = vld [vmem:[#allocation5 + $0x200] sm:$0xff]
    %v144 = vld [vmem:[#allocation5 + $0x208] sm:$0xff]
    %v145 = vld [vmem:[#allocation5 + $0x210] sm:$0xff]
    %v146 = vld [vmem:[#allocation5 + $0x218] sm:$0xff]
    %v147 = vld [vmem:[#allocation5 + $0x220] sm:$0xff]
    %v148 = vld [vmem:[#allocation5 + $0x228] sm:$0xff]
    %v149 = vld [vmem:[#allocation5 + $0x230] sm:$0xff]
    %v150 = vld [vmem:[#allocation5 + $0x238] sm:$0xff]
    %v151 = vld [vmem:[#allocation5 + $0x240] sm:$0xff]
    %v152 = vld [vmem:[#allocation5 + $0x248] sm:$0xff]
    %v153 = vld [vmem:[#allocation5 + $0x250] sm:$0xff]
    %v154 = vld [vmem:[#allocation5 + $0x258] sm:$0xff]
    %v155 = vld [vmem:[#allocation5 + $0x260] sm:$0xff]
    %v156 = vld [vmem:[#allocation5 + $0x268] sm:$0xff]
    %v157 = vld [vmem:[#allocation5 + $0x270] sm:$0xff]
    %v158 = vld [vmem:[#allocation5 + $0x278] sm:$0xff]
    %v159 = vld [vmem:[#allocation5 + $0x280] sm:$0xff]
    %v160 = vld [vmem:[#allocation5 + $0x288] sm:$0xff]
    %v161 = vld [vmem:[#allocation5 + $0x290] sm:$0xff]
    %v162 = vld [vmem:[#allocation5 + $0x298] sm:$0xff]
    %v163 = vld [vmem:[#allocation5 + $0x2a0] sm:$0xff]
    %v164 = vld [vmem:[#allocation5 + $0x2a8] sm:$0xff]
    %v165 = vld [vmem:[#allocation5 + $0x2b0] sm:$0xff]
    %v166 = vld [vmem:[#allocation5 + $0x2b8] sm:$0xff]
    %v167 = vld [vmem:[#allocation5 + $0x2c0] sm:$0xff]
    %v168 = vld [vmem:[#allocation5 + $0x2c8] sm:$0xff]
    %v169 = vld [vmem:[#allocation5 + $0x2d0] sm:$0xff]
    %v170 = vld [vmem:[#allocation5 + $0x2d8] sm:$0xff]
    %v171 = vld [vmem:[#allocation5 + $0x2e0] sm:$0xff]
    %v172 = vld [vmem:[#allocation5 + $0x2e8] sm:$0xff]
    %v173 = vld [vmem:[#allocation5 + $0x2f0] sm:$0xff]
    %v174 = vld [vmem:[#allocation5 + $0x2f8] sm:$0xff]
    %v175 = vld [vmem:[#allocation5 + $0x300] sm:$0xff]
    %v176 = vld [vmem:[#allocation5 + $0x308] sm:$0xff]
    %v177 = vld [vmem:[#allocation5 + $0x310] sm:$0xff]
    %v178 = vld [vmem:[#allocation5 + $0x318] sm:$0xff]
    %v179 = vld [vmem:[#allocation5 + $0x320] sm:$0xff]
    %v180 = vld [vmem:[#allocation5 + $0x328] sm:$0xff]
    %v181 = vld [vmem:[#allocation5 + $0x330] sm:$0xff]
    %v182 = vld [vmem:[#allocation5 + $0x338] sm:$0xff]
    %v183 = vld [vmem:[#allocation5 + $0x340] sm:$0xff]
    %v184 = vld [vmem:[#allocation5 + $0x348] sm:$0xff]
    %v185 = vld [vmem:[#allocation5 + $0x350] sm:$0xff]
    %v186 = vld [vmem:[#allocation5 + $0x358] sm:$0xff]
    %v187 = vld [vmem:[#allocation5 + $0x360] sm:$0xff]
    %v188 = vld [vmem:[#allocation5 + $0x368] sm:$0xff]
    %v189 = vld [vmem:[#allocation5 + $0x370] sm:$0xff]
    %v190 = vld [vmem:[#allocation5 + $0x378] sm:$0xff]
    %v191 = vld [vmem:[#allocation5 + $0x380] sm:$0xff]
    %v192 = vld [vmem:[#allocation5 + $0x388] sm:$0xff]
    %v193 = vld [vmem:[#allocation5 + $0x390] sm:$0xff]
    %v194 = vld [vmem:[#allocation5 + $0x398] sm:$0xff]
    %v195 = vld [vmem:[#allocation5 + $0x3a0] sm:$0xff]
    %v196 = vld [vmem:[#allocation5 + $0x3a8] sm:$0xff]
    %v197 = vld [vmem:[#allocation5 + $0x3b0] sm:$0xff]
    %v198 = vld [vmem:[#allocation5 + $0x3b8] sm:$0xff]
    %v199 = vld [vmem:[#allocation5 + $0x3c0] sm:$0xff]
    %v200 = vld [vmem:[#allocation5 + $0x3c8] sm:$0xff]
    %v201 = vld [vmem:[#allocation5 + $0x3d0] sm:$0xff]
    %v202 = vld [vmem:[#allocation5 + $0x3d8] sm:$0xff]
    %v203 = vld [vmem:[#allocation5 + $0x3e0] sm:$0xff]
    %v204 = vld [vmem:[#allocation5 + $0x3e8] sm:$0xff]
    %v205 = vld [vmem:[#allocation5 + $0x3f0] sm:$0xff]
    %v206 = vld [vmem:[#allocation5 + $0x3f8] sm:$0xff]
    %v207 = vld [vmem:[#allocation5 + $0x400] sm:$0xff]
    %v208 = vld [vmem:[#allocation5 + $0x408] sm:$0xff]
    %v209 = vld [vmem:[#allocation5 + $0x410] sm:$0xff]
    %v210 = vld [vmem:[#allocation5 + $0x418] sm:$0xff]
    %v211 = vld [vmem:[#allocation5 + $0x420] sm:$0xff]
    %v212 = vld [vmem:[#allocation5 + $0x428] sm:$0xff]
    %v213 = vld [vmem:[#allocation5 + $0x430] sm:$0xff]
    %v214 = vld [vmem:[#allocation5 + $0x438] sm:$0xff]
    %v215 = vld [vmem:[#allocation5 + $0x440] sm:$0xff]
    %v216 = vld [vmem:[#allocation5 + $0x448] sm:$0xff]
    %v217 = vld [vmem:[#allocation5 + $0x450] sm:$0xff]
    %v218 = vld [vmem:[#allocation5 + $0x458] sm:$0xff]
    %v219 = vld [vmem:[#allocation5 + $0x460] sm:$0xff]
    %v220 = vld [vmem:[#allocation5 + $0x468] sm:$0xff]
    %v221 = vld [vmem:[#allocation5 + $0x470] sm:$0xff]
    %v222 = vld [vmem:[#allocation5 + $0x478] sm:$0xff]
    %v223 = vld [vmem:[#allocation5 + $0x480] sm:$0xff]
    %v224 = vld [vmem:[#allocation5 + $0x488] sm:$0xff]
    %v225 = vld [vmem:[#allocation5 + $0x490] sm:$0xff]
    %v226 = vld [vmem:[#allocation5 + $0x498] sm:$0xff]
    %v227 = vld [vmem:[#allocation5 + $0x4a0] sm:$0xff]
    %v228 = vld [vmem:[#allocation5 + $0x4a8] sm:$0xff]
    %v229 = vld [vmem:[#allocation5 + $0x4b0] sm:$0xff]
    %v230 = vld [vmem:[#allocation5 + $0x4b8] sm:$0xff]
    %v231 = vld [vmem:[#allocation5 + $0x4c0] sm:$0xff]
    %v232 = vld [vmem:[#allocation5 + $0x4c8] sm:$0xff]
    %v233 = vld [vmem:[#allocation5 + $0x4d0] sm:$0xff]
    %v234 = vld [vmem:[#allocation5 + $0x4d8] sm:$0xff]
    %v235 = vld [vmem:[#allocation5 + $0x4e0] sm:$0xff]
    %v236 = vld [vmem:[#allocation5 + $0x4e8] sm:$0xff]
    %v237 = vld [vmem:[#allocation5 + $0x4f0] sm:$0xff]
    %v238 = vld [vmem:[#allocation5 + $0x4f8] sm:$0xff]
    %v239 = vld [vmem:[#allocation5 + $0x500] sm:$0xff]
    %v240 = vld [vmem:[#allocation5 + $0x508] sm:$0xff]
    %v241 = vld [vmem:[#allocation5 + $0x510] sm:$0xff]
    %v242 = vld [vmem:[#allocation5 + $0x518] sm:$0xff]
    %v243 = vld [vmem:[#allocation5 + $0x520] sm:$0xff]
    %v244 = vld [vmem:[#allocation5 + $0x528] sm:$0xff]
    %v245 = vld [vmem:[#allocation5 + $0x530] sm:$0xff]
    %v246 = vld [vmem:[#allocation5 + $0x538] sm:$0xff]
    %v247 = vld [vmem:[#allocation5 + $0x540] sm:$0xff]
    %v248 = vld [vmem:[#allocation5 + $0x548] sm:$0xff]
    %v249 = vld [vmem:[#allocation5 + $0x550] sm:$0xff]
    %v250 = vld [vmem:[#allocation5 + $0x558] sm:$0xff]
    %v251 = vld [vmem:[#allocation5 + $0x560] sm:$0xff]
    %v252 = vld [vmem:[#allocation5 + $0x568] sm:$0xff]
    %v253 = vld [vmem:[#allocation5 + $0x570] sm:$0xff]
    %v254 = vld [vmem:[#allocation5 + $0x578] sm:$0xff]
    %v255 = vld [vmem:[#allocation5 + $0x580] sm:$0xff]
    %v256 = vld [vmem:[#allocation5 + $0x588] sm:$0xff]
    %v257 = vld [vmem:[#allocation5 + $0x590] sm:$0xff]
    %v258 = vld [vmem:[#allocation5 + $0x598] sm:$0xff]
    %v259 = vld [vmem:[#allocation5 + $0x5a0] sm:$0xff]
    %v260 = vld [vmem:[#allocation5 + $0x5a8] sm:$0xff]
    %v261 = vld [vmem:[#allocation5 + $0x5b0] sm:$0xff]
    %v262 = vld [vmem:[#allocation5 + $0x5b8] sm:$0xff]
    %v263 = vld [vmem:[#allocation5 + $0x5c0] sm:$0xff]
    %v264 = vld [vmem:[#allocation5 + $0x5c8] sm:$0xff]
    %v265 = vld [vmem:[#allocation5 + $0x5d0] sm:$0xff]
    %v266 = vld [vmem:[#allocation5 + $0x5d8] sm:$0xff]
    %v267 = vld [vmem:[#allocation5 + $0x5e0] sm:$0xff]
    %v268 = vld [vmem:[#allocation5 + $0x5e8] sm:$0xff]
    %v269 = vld [vmem:[#allocation5 + $0x5f0] sm:$0xff]
    %v270 = vld [vmem:[#allocation5 + $0x5f8] sm:$0xff]
    %v271 = vld [vmem:[#allocation5 + $0x600] sm:$0xff]
    %v272 = vld [vmem:[#allocation5 + $0x608] sm:$0xff]
    %v273 = vld [vmem:[#allocation5 + $0x610] sm:$0xff]
    %v274 = vld [vmem:[#allocation5 + $0x618] sm:$0xff]
    %v275 = vld [vmem:[#allocation5 + $0x620] sm:$0xff]
    %v276 = vld [vmem:[#allocation5 + $0x628] sm:$0xff]
    %v277 = vld [vmem:[#allocation5 + $0x630] sm:$0xff]
    %v278 = vld [vmem:[#allocation5 + $0x638] sm:$0xff]
    %v279 = vld [vmem:[#allocation5 + $0x640] sm:$0xff]
    %v280 = vld [vmem:[#allocation5 + $0x648] sm:$0xff]
    %v281 = vld [vmem:[#allocation5 + $0x650] sm:$0xff]
    %v282 = vld [vmem:[#allocation5 + $0x658] sm:$0xff]
    %v283 = vld [vmem:[#allocation5 + $0x660] sm:$0xff]
    %v284 = vld [vmem:[#allocation5 + $0x668] sm:$0xff]
    %v285 = vld [vmem:[#allocation5 + $0x670] sm:$0xff]
    %v286 = vld [vmem:[#allocation5 + $0x678] sm:$0xff]
    %v287 = vld [vmem:[#allocation5 + $0x680] sm:$0xff]
    %v288 = vld [vmem:[#allocation5 + $0x688] sm:$0xff]
    %v289 = vld [vmem:[#allocation5 + $0x690] sm:$0xff]
    %v290 = vld [vmem:[#allocation5 + $0x698] sm:$0xff]
    %v291 = vld [vmem:[#allocation5 + $0x6a0] sm:$0xff]
    %v292 = vld [vmem:[#allocation5 + $0x6a8] sm:$0xff]
    %v293 = vld [vmem:[#allocation5 + $0x6b0] sm:$0xff]
    %v294 = vld [vmem:[#allocation5 + $0x6b8] sm:$0xff]
    %v295 = vld [vmem:[#allocation5 + $0x6c0] sm:$0xff]
    %v296 = vld [vmem:[#allocation5 + $0x6c8] sm:$0xff]
    %v297 = vld [vmem:[#allocation5 + $0x6d0] sm:$0xff]
    %v298 = vld [vmem:[#allocation5 + $0x6d8] sm:$0xff]
    %v299 = vld [vmem:[#allocation5 + $0x6e0] sm:$0xff]
    %v300 = vld [vmem:[#allocation5 + $0x6e8] sm:$0xff]
    %v301 = vld [vmem:[#allocation5 + $0x6f0] sm:$0xff]
    %v302 = vld [vmem:[#allocation5 + $0x6f8] sm:$0xff]
    %v303 = vld [vmem:[#allocation5 + $0x700] sm:$0xff]
    %v304 = vld [vmem:[#allocation5 + $0x708] sm:$0xff]
    %v305 = vld [vmem:[#allocation5 + $0x710] sm:$0xff]
    %v306 = vld [vmem:[#allocation5 + $0x718] sm:$0xff]
    %v307 = vld [vmem:[#allocation5 + $0x720] sm:$0xff]
    %v308 = vld [vmem:[#allocation5 + $0x728] sm:$0xff]
    %v309 = vld [vmem:[#allocation5 + $0x730] sm:$0xff]
    %v310 = vld [vmem:[#allocation5 + $0x738] sm:$0xff]
    %v311 = vld [vmem:[#allocation5 + $0x740] sm:$0xff]
    %v312 = vld [vmem:[#allocation5 + $0x748] sm:$0xff]
    %v313 = vld [vmem:[#allocation5 + $0x750] sm:$0xff]
    %v314 = vld [vmem:[#allocation5 + $0x758] sm:$0xff]
    %v315 = vld [vmem:[#allocation5 + $0x760] sm:$0xff]
    %v316 = vld [vmem:[#allocation5 + $0x768] sm:$0xff]
    %v317 = vld [vmem:[#allocation5 + $0x770] sm:$0xff]
    %v318 = vld [vmem:[#allocation5 + $0x778] sm:$0xff]
    %v319 = vld [vmem:[#allocation5 + $0x780] sm:$0xff]
    %v320 = vld [vmem:[#allocation5 + $0x788] sm:$0xff]
    %v321 = vld [vmem:[#allocation5 + $0x790] sm:$0xff]
    %v322 = vld [vmem:[#allocation5 + $0x798] sm:$0xff]
    %v323 = vld [vmem:[#allocation5 + $0x7a0] sm:$0xff]
    %v324 = vld [vmem:[#allocation5 + $0x7a8] sm:$0xff]
    %v325 = vld [vmem:[#allocation5 + $0x7b0] sm:$0xff]
    %v326 = vld [vmem:[#allocation5 + $0x7b8] sm:$0xff]
    %v327 = vld [vmem:[#allocation5 + $0x7c0] sm:$0xff]
    %v328 = vld [vmem:[#allocation5 + $0x7c8] sm:$0xff]
    %v329 = vld [vmem:[#allocation5 + $0x7d0] sm:$0xff]
    %v330 = vld [vmem:[#allocation5 + $0x7d8] sm:$0xff]
    %v331 = vld [vmem:[#allocation5 + $0x7e0] sm:$0xff]
    %v332 = vld [vmem:[#allocation5 + $0x7e8] sm:$0xff]
    %v333 = vld [vmem:[#allocation5 + $0x7f0] sm:$0xff]
    %v334 = vld [vmem:[#allocation5 + $0x7f8] sm:$0xff]
    %v335 = vld [vmem:[#allocation5 + $0x800] sm:$0xff]
    %v336 = vld [vmem:[#allocation5 + $0x808] sm:$0xff]
    %v337 = vld [vmem:[#allocation5 + $0x810] sm:$0xff]
    %v338 = vld [vmem:[#allocation5 + $0x818] sm:$0xff]
    %v339 = vld [vmem:[#allocation5 + $0x820] sm:$0xff]
    %v340 = vld [vmem:[#allocation5 + $0x828] sm:$0xff]
    %v341 = vld [vmem:[#allocation5 + $0x830] sm:$0xff]
    %v342 = vld [vmem:[#allocation5 + $0x838] sm:$0xff]
    %v343 = vld [vmem:[#allocation5 + $0x840] sm:$0xff]
    %v344 = vld [vmem:[#allocation5 + $0x848] sm:$0xff]
    %v345 = vld [vmem:[#allocation5 + $0x850] sm:$0xff]
    %v346 = vld [vmem:[#allocation5 + $0x858] sm:$0xff]
    %v347 = vld [vmem:[#allocation5 + $0x860] sm:$0xff]
    %v348 = vld [vmem:[#allocation5 + $0x868] sm:$0xff]
    %v349 = vld [vmem:[#allocation5 + $0x870] sm:$0xff]
    %v350 = vld [vmem:[#allocation5 + $0x878] sm:$0xff]
    %v351 = vld [vmem:[#allocation5 + $0x880] sm:$0xff]
    %v352 = vld [vmem:[#allocation5 + $0x888] sm:$0xff]
    %v353 = vld [vmem:[#allocation5 + $0x890] sm:$0xff]
    %v354 = vld [vmem:[#allocation5 + $0x898] sm:$0xff]
    %v355 = vld [vmem:[#allocation5 + $0x8a0] sm:$0xff]
    %v356 = vld [vmem:[#allocation5 + $0x8a8] sm:$0xff]
    %v357 = vld [vmem:[#allocation5 + $0x8b0] sm:$0xff]
    %v358 = vld [vmem:[#allocation5 + $0x8b8] sm:$0xff]
    %v359 = vld [vmem:[#allocation5 + $0x8c0] sm:$0xff]
    %v360 = vld [vmem:[#allocation5 + $0x8c8] sm:$0xff]
    %v361 = vld [vmem:[#allocation5 + $0x8d0] sm:$0xff]
    %v362 = vld [vmem:[#allocation5 + $0x8d8] sm:$0xff]
    %v363 = vld [vmem:[#allocation5 + $0x8e0] sm:$0xff]
    %v364 = vld [vmem:[#allocation5 + $0x8e8] sm:$0xff]
    %v365 = vld [vmem:[#allocation5 + $0x8f0] sm:$0xff]
    %v366 = vld [vmem:[#allocation5 + $0x8f8] sm:$0xff]
    %v367 = vld [vmem:[#allocation5 + $0x900] sm:$0xff]
    %v368 = vld [vmem:[#allocation5 + $0x908] sm:$0xff]
    %v369 = vld [vmem:[#allocation5 + $0x910] sm:$0xff]
    %v370 = vld [vmem:[#allocation5 + $0x918] sm:$0xff]
    %v371 = vld [vmem:[#allocation5 + $0x920] sm:$0xff]
    %v372 = vld [vmem:[#allocation5 + $0x928] sm:$0xff]
    %v373 = vld [vmem:[#allocation5 + $0x930] sm:$0xff]
    %v374 = vld [vmem:[#allocation5 + $0x938] sm:$0xff]
    %v375 = vld [vmem:[#allocation5 + $0x940] sm:$0xff]
    %v376 = vld [vmem:[#allocation5 + $0x948] sm:$0xff]
    %v377 = vld [vmem:[#allocation5 + $0x950] sm:$0xff]
    %v378 = vld [vmem:[#allocation5 + $0x958] sm:$0xff]
    %v379 = vld [vmem:[#allocation5 + $0x960] sm:$0xff]
    %v380 = vld [vmem:[#allocation5 + $0x968] sm:$0xff]
    %v381 = vld [vmem:[#allocation5 + $0x970] sm:$0xff]
    %v382 = vld [vmem:[#allocation5 + $0x978] sm:$0xff]
    %v383 = vld [vmem:[#allocation5 + $0x980] sm:$0xff]
    %v384 = vld [vmem:[#allocation5 + $0x988] sm:$0xff]
    %v385 = vld [vmem:[#allocation5 + $0x990] sm:$0xff]
    %v386 = vld [vmem:[#allocation5 + $0x998] sm:$0xff]
    %v387 = vld [vmem:[#allocation5 + $0x9a0] sm:$0xff]
    %v388 = vld [vmem:[#allocation5 + $0x9a8] sm:$0xff]
    %v389 = vld [vmem:[#allocation5 + $0x9b0] sm:$0xff]
    %v390 = vld [vmem:[#allocation5 + $0x9b8] sm:$0xff]
    %v391 = vld [vmem:[#allocation5 + $0x9c0] sm:$0xff]
    %v392 = vld [vmem:[#allocation5 + $0x9c8] sm:$0xff]
    %v393 = vld [vmem:[#allocation5 + $0x9d0] sm:$0xff]
    %v394 = vld [vmem:[#allocation5 + $0x9d8] sm:$0xff]
    %v395 = vld [vmem:[#allocation5 + $0x9e0] sm:$0xff]
    %v396 = vld [vmem:[#allocation5 + $0x9e8] sm:$0xff]
    %v397 = vld [vmem:[#allocation5 + $0x9f0] sm:$0xff]
    %v398 = vld [vmem:[#allocation5 + $0x9f8] sm:$0xff]
    %v399 = vld [vmem:[#allocation5 + $0xa00] sm:$0xff]
    %v400 = vld [vmem:[#allocation5 + $0xa08] sm:$0xff]
    %v401 = vld [vmem:[#allocation5 + $0xa10] sm:$0xff]
    %v402 = vld [vmem:[#allocation5 + $0xa18] sm:$0xff]
    %v403 = vld [vmem:[#allocation5 + $0xa20] sm:$0xff]
    %v404 = vld [vmem:[#allocation5 + $0xa28] sm:$0xff]
    %v405 = vld [vmem:[#allocation5 + $0xa30] sm:$0xff]
    %v406 = vld [vmem:[#allocation5 + $0xa38] sm:$0xff]
    %v407 = vld [vmem:[#allocation5 + $0xa40] sm:$0xff]
    %v408 = vld [vmem:[#allocation5 + $0xa48] sm:$0xff]
    %v409 = vld [vmem:[#allocation5 + $0xa50] sm:$0xff]
    %v410 = vld [vmem:[#allocation5 + $0xa58] sm:$0xff]
    %v411 = vld [vmem:[#allocation5 + $0xa60] sm:$0xff]
    %v412 = vld [vmem:[#allocation5 + $0xa68] sm:$0xff]
    %v413 = vld [vmem:[#allocation5 + $0xa70] sm:$0xff]
    %v414 = vld [vmem:[#allocation5 + $0xa78] sm:$0xff]
    %v415 = vld [vmem:[#allocation5 + $0xa80] sm:$0xff]
    %v416 = vld [vmem:[#allocation5 + $0xa88] sm:$0xff]
    %v417 = vld [vmem:[#allocation5 + $0xa90] sm:$0xff]
    %v418 = vld [vmem:[#allocation5 + $0xa98] sm:$0xff]
    %v419 = vld [vmem:[#allocation5 + $0xaa0] sm:$0xff]
    %v420 = vld [vmem:[#allocation5 + $0xaa8] sm:$0xff]
    %v421 = vld [vmem:[#allocation5 + $0xab0] sm:$0xff]
    %v422 = vld [vmem:[#allocation5 + $0xab8] sm:$0xff]
    %v423 = vld [vmem:[#allocation5 + $0xac0] sm:$0xff]
    %v424 = vld [vmem:[#allocation5 + $0xac8] sm:$0xff]
    %v425 = vld [vmem:[#allocation5 + $0xad0] sm:$0xff]
    %v426 = vld [vmem:[#allocation5 + $0xad8] sm:$0xff]
    %v427 = vld [vmem:[#allocation5 + $0xae0] sm:$0xff]
    %v428 = vld [vmem:[#allocation5 + $0xae8] sm:$0xff]
    %v429 = vld [vmem:[#allocation5 + $0xaf0] sm:$0xff]
    %v430 = vld [vmem:[#allocation5 + $0xaf8] sm:$0xff]
    %v431 = vld [vmem:[#allocation5 + $0xb00] sm:$0xff]
    %v432 = vld [vmem:[#allocation5 + $0xb08] sm:$0xff]
    %v433 = vld [vmem:[#allocation5 + $0xb10] sm:$0xff]
    %v434 = vld [vmem:[#allocation5 + $0xb18] sm:$0xff]
    %v435 = vld [vmem:[#allocation5 + $0xb20] sm:$0xff]
    %v436 = vld [vmem:[#allocation5 + $0xb28] sm:$0xff]
    %v437 = vld [vmem:[#allocation5 + $0xb30] sm:$0xff]
    %v438 = vld [vmem:[#allocation5 + $0xb38] sm:$0xff]
    %v439 = vld [vmem:[#allocation5 + $0xb40] sm:$0xff]
    %v440 = vld [vmem:[#allocation5 + $0xb48] sm:$0xff]
    %v441 = vld [vmem:[#allocation5 + $0xb50] sm:$0xff]
    %v442 = vld [vmem:[#allocation5 + $0xb58] sm:$0xff]
    %v443 = vld [vmem:[#allocation5 + $0xb60] sm:$0xff]
    %v444 = vld [vmem:[#allocation5 + $0xb68] sm:$0xff]
    %v445 = vld [vmem:[#allocation5 + $0xb70] sm:$0xff]
    %v446 = vld [vmem:[#allocation5 + $0xb78] sm:$0xff]
    %v447 = vld [vmem:[#allocation5 + $0xb80] sm:$0xff]
    %v448 = vld [vmem:[#allocation5 + $0xb88] sm:$0xff]
    %v449 = vld [vmem:[#allocation5 + $0xb90] sm:$0xff]
    %v450 = vld [vmem:[#allocation5 + $0xb98] sm:$0xff]
    %v451 = vld [vmem:[#allocation5 + $0xba0] sm:$0xff]
    %v452 = vld [vmem:[#allocation5 + $0xba8] sm:$0xff]
    %v453 = vld [vmem:[#allocation5 + $0xbb0] sm:$0xff]
    %v454 = vld [vmem:[#allocation5 + $0xbb8] sm:$0xff]
    %v455 = vld [vmem:[#allocation5 + $0xbc0] sm:$0xff]
    %v456 = vld [vmem:[#allocation5 + $0xbc8] sm:$0xff]
    %v457 = vld [vmem:[#allocation5 + $0xbd0] sm:$0xff]
    %v458 = vld [vmem:[#allocation5 + $0xbd8] sm:$0xff]
    %v459 = vld [vmem:[#allocation5 + $0xbe0] sm:$0xff]
    %v460 = vld [vmem:[#allocation5 + $0xbe8] sm:$0xff]
    %v461 = vld [vmem:[#allocation5 + $0xbf0] sm:$0xff]
    %v462 = vld [vmem:[#allocation5 + $0xbf8] sm:$0xff]
    %v463 = vld [vmem:[#allocation7] sm:$0xff]
    %v464 = vld [vmem:[#allocation7 + $0x8] sm:$0xf]
    %v467 = vperm.slane %v463, 0
    %v468 = vperm.slane %v463, 1
    %v469 = vperm.slane %v463, 2
    %v470 = vperm.slane %v463, 3
    %v471 = vperm.slane %v463, 4
    %v472 = vperm.slane %v463, 5
    %v473 = vperm.slane %v463, 6
    %v474 = vperm.slane %v463, 7
    %v475 = vperm.slane %v464, 0
    %v476 = vperm.slane %v464, 1
    %v477 = vperm.slane %v464, 2
    %v478 = vperm.slane %v464, 3
    %492 = vst [vmem:[#allocation1] ss:$4 sm:$0xff] %v78
    %v493 = vld.sshfl [vmem:[#allocation1] sm:$0xff pattern:$0x73625140]
    %v494 = vld.sshfl [vmem:[#allocation1 + $0x8] sm:$0xff pattern:$0x73625140]
    %497 = vmatpush.msra.mxu0 %v259
    %498 = vmatpush.msra.mxu0 %v247
    %499 = vmatpush.msra.mxu0 %v235
    %500 = vmatpush.msra.mxu0 %v223
    %501 = vmatpush.msra.mxu0 %v211
    %502 = vmatpush.msra.mxu0 %v199
    %503 = vmatpush.msra.mxu0 %v187
    %504 = vmatpush.msra.mxu0 %v175
    %505 = vmatpush.msra.mxu0 %v163
    %506 = vmatpush.msra.mxu0 %v151
    %507 = vmatpush.msra.mxu0 %v139
    %508 = vmatpush.msra.mxu0 %v127
    %509 = vmatpush.msra.mxu0 %v115
    %510 = vmatpush.msra.mxu0 %v103
    %511 = vmatpush.msra.mxu0 %v91
    %512 = vmatpush.msra.mxu0 %v79
    %513 = vmatmul.f32.gmra.mxu0 %v493
    %v514 = vpop.f32.mrf.mxu0
    %v515 = vadd.f32 %v467, %v514
    %516 = vdwg.mxu0
    %517 = vmatpush.msra.mxu0 %v451
    %518 = vmatpush.msra.mxu0 %v439
    %519 = vmatpush.msra.mxu0 %v427
    %520 = vmatpush.msra.mxu0 %v415
    %521 = vmatpush.msra.mxu0 %v403
    %522 = vmatpush.msra.mxu0 %v391
    %523 = vmatpush.msra.mxu0 %v379
    %524 = vmatpush.msra.mxu0 %v367
    %525 = vmatpush.msra.mxu0 %v355
    %526 = vmatpush.msra.mxu0 %v343
    %527 = vmatpush.msra.mxu0 %v331
    %528 = vmatpush.msra.mxu0 %v319
    %529 = vmatpush.msra.mxu0 %v307
    %530 = vmatpush.msra.mxu0 %v295
    %531 = vmatpush.msra.mxu0 %v283
    %532 = vmatpush.msra.mxu0 %v271
    %533 = vmatmul.f32.gmra.mxu0 %v494
    %v534 = vpop.f32.mrf.mxu0
    %v535 = vadd.f32 %v515, %v534
    %536 = vdwg.mxu0
    %537 = vmatpush.msra.mxu0 %v260
    %538 = vmatpush.msra.mxu0 %v248
    %539 = vmatpush.msra.mxu0 %v236
    %540 = vmatpush.msra.mxu0 %v224
    %541 = vmatpush.msra.mxu0 %v212
    %542 = vmatpush.msra.mxu0 %v200
    %543 = vmatpush.msra.mxu0 %v188
    %544 = vmatpush.msra.mxu0 %v176
    %545 = vmatpush.msra.mxu0 %v164
    %546 = vmatpush.msra.mxu0 %v152
    %547 = vmatpush.msra.mxu0 %v140
    %548 = vmatpush.msra.mxu0 %v128
    %549 = vmatpush.msra.mxu0 %v116
    %550 = vmatpush.msra.mxu0 %v104
    %551 = vmatpush.msra.mxu0 %v92
    %552 = vmatpush.msra.mxu0 %v80
    %553 = vmatmul.f32.gmra.mxu0 %v493
    %v554 = vpop.f32.mrf.mxu0
    %v555 = vadd.f32 %v468, %v554
    %556 = vdwg.mxu0
    %557 = vmatpush.msra.mxu0 %v452
    %558 = vmatpush.msra.mxu0 %v440
    %559 = vmatpush.msra.mxu0 %v428
    %560 = vmatpush.msra.mxu0 %v416
    %561 = vmatpush.msra.mxu0 %v404
    %562 = vmatpush.msra.mxu0 %v392
    %563 = vmatpush.msra.mxu0 %v380
    %564 = vmatpush.msra.mxu0 %v368
    %565 = vmatpush.msra.mxu0 %v356
    %566 = vmatpush.msra.mxu0 %v344
    %567 = vmatpush.msra.mxu0 %v332
    %568 = vmatpush.msra.mxu0 %v320
    %569 = vmatpush.msra.mxu0 %v308
    %570 = vmatpush.msra.mxu0 %v296
    %571 = vmatpush.msra.mxu0 %v284
    %572 = vmatpush.msra.mxu0 %v272
    %573 = vmatmul.f32.gmra.mxu0 %v494
    %v574 = vpop.f32.mrf.mxu0
    %v575 = vadd.f32 %v555, %v574
    %576 = vdwg.mxu0
    %577 = vmatpush.msra.mxu0 %v261
    %578 = vmatpush.msra.mxu0 %v249
    %579 = vmatpush.msra.mxu0 %v237
    %580 = vmatpush.msra.mxu0 %v225
    %581 = vmatpush.msra.mxu0 %v213
    %582 = vmatpush.msra.mxu0 %v201
    %583 = vmatpush.msra.mxu0 %v189
    %584 = vmatpush.msra.mxu0 %v177
    %585 = vmatpush.msra.mxu0 %v165
    %586 = vmatpush.msra.mxu0 %v153
    %587 = vmatpush.msra.mxu0 %v141
    %588 = vmatpush.msra.mxu0 %v129
    %589 = vmatpush.msra.mxu0 %v117
    %590 = vmatpush.msra.mxu0 %v105
    %591 = vmatpush.msra.mxu0 %v93
    %592 = vmatpush.msra.mxu0 %v81
    %593 = vmatmul.f32.gmra.mxu0 %v493
    %v594 = vpop.f32.mrf.mxu0
    %v595 = vadd.f32 %v469, %v594
    %596 = vdwg.mxu0
    %597 = vmatpush.msra.mxu0 %v453
    %598 = vmatpush.msra.mxu0 %v441
    %599 = vmatpush.msra.mxu0 %v429
    %600 = vmatpush.msra.mxu0 %v417
    %601 = vmatpush.msra.mxu0 %v405
    %602 = vmatpush.msra.mxu0 %v393
    %603 = vmatpush.msra.mxu0 %v381
    %604 = vmatpush.msra.mxu0 %v369
    %605 = vmatpush.msra.mxu0 %v357
    %606 = vmatpush.msra.mxu0 %v345
    %607 = vmatpush.msra.mxu0 %v333
    %608 = vmatpush.msra.mxu0 %v321
    %609 = vmatpush.msra.mxu0 %v309
    %610 = vmatpush.msra.mxu0 %v297
    %611 = vmatpush.msra.mxu0 %v285
    %612 = vmatpush.msra.mxu0 %v273
    %613 = vmatmul.f32.gmra.mxu0 %v494
    %v614 = vpop.f32.mrf.mxu0
    %v615 = vadd.f32 %v595, %v614
    %616 = vdwg.mxu0
    %617 = vmatpush.msra.mxu0 %v262
    %618 = vmatpush.msra.mxu0 %v250
    %619 = vmatpush.msra.mxu0 %v238
    %620 = vmatpush.msra.mxu0 %v226
    %621 = vmatpush.msra.mxu0 %v214
    %622 = vmatpush.msra.mxu0 %v202
    %623 = vmatpush.msra.mxu0 %v190
    %624 = vmatpush.msra.mxu0 %v178
    %625 = vmatpush.msra.mxu0 %v166
    %626 = vmatpush.msra.mxu0 %v154
    %627 = vmatpush.msra.mxu0 %v142
    %628 = vmatpush.msra.mxu0 %v130
    %629 = vmatpush.msra.mxu0 %v118
    %630 = vmatpush.msra.mxu0 %v106
    %631 = vmatpush.msra.mxu0 %v94
    %632 = vmatpush.msra.mxu0 %v82
    %633 = vmatmul.f32.gmra.mxu0 %v493
    %v634 = vpop.f32.mrf.mxu0
    %v635 = vadd.f32 %v470, %v634
    %636 = vdwg.mxu0
    %637 = vmatpush.msra.mxu0 %v454
    %638 = vmatpush.msra.mxu0 %v442
    %639 = vmatpush.msra.mxu0 %v430
    %640 = vmatpush.msra.mxu0 %v418
    %641 = vmatpush.msra.mxu0 %v406
    %642 = vmatpush.msra.mxu0 %v394
    %643 = vmatpush.msra.mxu0 %v382
    %644 = vmatpush.msra.mxu0 %v370
    %645 = vmatpush.msra.mxu0 %v358
    %646 = vmatpush.msra.mxu0 %v346
    %647 = vmatpush.msra.mxu0 %v334
    %648 = vmatpush.msra.mxu0 %v322
    %649 = vmatpush.msra.mxu0 %v310
    %650 = vmatpush.msra.mxu0 %v298
    %651 = vmatpush.msra.mxu0 %v286
    %652 = vmatpush.msra.mxu0 %v274
    %653 = vmatmul.f32.gmra.mxu0 %v494
    %v654 = vpop.f32.mrf.mxu0
    %v655 = vadd.f32 %v635, %v654
    %656 = vdwg.mxu0
    %657 = vmatpush.msra.mxu0 %v263
    %658 = vmatpush.msra.mxu0 %v251
    %659 = vmatpush.msra.mxu0 %v239
    %660 = vmatpush.msra.mxu0 %v227
    %661 = vmatpush.msra.mxu0 %v215
    %662 = vmatpush.msra.mxu0 %v203
    %663 = vmatpush.msra.mxu0 %v191
    %664 = vmatpush.msra.mxu0 %v179
    %665 = vmatpush.msra.mxu0 %v167
    %666 = vmatpush.msra.mxu0 %v155
    %667 = vmatpush.msra.mxu0 %v143
    %668 = vmatpush.msra.mxu0 %v131
    %669 = vmatpush.msra.mxu0 %v119
    %670 = vmatpush.msra.mxu0 %v107
    %671 = vmatpush.msra.mxu0 %v95
    %672 = vmatpush.msra.mxu0 %v83
    %673 = vmatmul.f32.gmra.mxu0 %v493
    %v674 = vpop.f32.mrf.mxu0
    %v675 = vadd.f32 %v471, %v674
    %676 = vdwg.mxu0
    %677 = vmatpush.msra.mxu0 %v455
    %678 = vmatpush.msra.mxu0 %v443
    %679 = vmatpush.msra.mxu0 %v431
    %680 = vmatpush.msra.mxu0 %v419
    %681 = vmatpush.msra.mxu0 %v407
    %682 = vmatpush.msra.mxu0 %v395
    %683 = vmatpush.msra.mxu0 %v383
    %684 = vmatpush.msra.mxu0 %v371
    %685 = vmatpush.msra.mxu0 %v359
    %686 = vmatpush.msra.mxu0 %v347
    %687 = vmatpush.msra.mxu0 %v335
    %688 = vmatpush.msra.mxu0 %v323
    %689 = vmatpush.msra.mxu0 %v311
    %690 = vmatpush.msra.mxu0 %v299
    %691 = vmatpush.msra.mxu0 %v287
    %692 = vmatpush.msra.mxu0 %v275
    %693 = vmatmul.f32.gmra.mxu0 %v494
    %v694 = vpop.f32.mrf.mxu0
    %v695 = vadd.f32 %v675, %v694
    %696 = vdwg.mxu0
    %697 = vmatpush.msra.mxu0 %v264
    %698 = vmatpush.msra.mxu0 %v252
    %699 = vmatpush.msra.mxu0 %v240
    %700 = vmatpush.msra.mxu0 %v228
    %701 = vmatpush.msra.mxu0 %v216
    %702 = vmatpush.msra.mxu0 %v204
    %703 = vmatpush.msra.mxu0 %v192
    %704 = vmatpush.msra.mxu0 %v180
    %705 = vmatpush.msra.mxu0 %v168
    %706 = vmatpush.msra.mxu0 %v156
    %707 = vmatpush.msra.mxu0 %v144
    %708 = vmatpush.msra.mxu0 %v132
    %709 = vmatpush.msra.mxu0 %v120
    %710 = vmatpush.msra.mxu0 %v108
    %711 = vmatpush.msra.mxu0 %v96
    %712 = vmatpush.msra.mxu0 %v84
    %713 = vmatmul.f32.gmra.mxu0 %v493
    %v714 = vpop.f32.mrf.mxu0
    %v715 = vadd.f32 %v472, %v714
    %716 = vdwg.mxu0
    %717 = vmatpush.msra.mxu0 %v456
    %718 = vmatpush.msra.mxu0 %v444
    %719 = vmatpush.msra.mxu0 %v432
    %720 = vmatpush.msra.mxu0 %v420
    %721 = vmatpush.msra.mxu0 %v408
    %722 = vmatpush.msra.mxu0 %v396
    %723 = vmatpush.msra.mxu0 %v384
    %724 = vmatpush.msra.mxu0 %v372
    %725 = vmatpush.msra.mxu0 %v360
    %726 = vmatpush.msra.mxu0 %v348
    %727 = vmatpush.msra.mxu0 %v336
    %728 = vmatpush.msra.mxu0 %v324
    %729 = vmatpush.msra.mxu0 %v312
    %730 = vmatpush.msra.mxu0 %v300
    %731 = vmatpush.msra.mxu0 %v288
    %732 = vmatpush.msra.mxu0 %v276
    %733 = vmatmul.f32.gmra.mxu0 %v494
    %v734 = vpop.f32.mrf.mxu0
    %v735 = vadd.f32 %v715, %v734
    %736 = vdwg.mxu0
    %737 = vmatpush.msra.mxu0 %v265
    %738 = vmatpush.msra.mxu0 %v253
    %739 = vmatpush.msra.mxu0 %v241
    %740 = vmatpush.msra.mxu0 %v229
    %741 = vmatpush.msra.mxu0 %v217
    %742 = vmatpush.msra.mxu0 %v205
    %743 = vmatpush.msra.mxu0 %v193
    %744 = vmatpush.msra.mxu0 %v181
    %745 = vmatpush.msra.mxu0 %v169
    %746 = vmatpush.msra.mxu0 %v157
    %747 = vmatpush.msra.mxu0 %v145
    %748 = vmatpush.msra.mxu0 %v133
    %749 = vmatpush.msra.mxu0 %v121
    %750 = vmatpush.msra.mxu0 %v109
    %751 = vmatpush.msra.mxu0 %v97
    %752 = vmatpush.msra.mxu0 %v85
    %753 = vmatmul.f32.gmra.mxu0 %v493
    %v754 = vpop.f32.mrf.mxu0
    %v755 = vadd.f32 %v473, %v754
    %756 = vdwg.mxu0
    %757 = vmatpush.msra.mxu0 %v457
    %758 = vmatpush.msra.mxu0 %v445
    %759 = vmatpush.msra.mxu0 %v433
    %760 = vmatpush.msra.mxu0 %v421
    %761 = vmatpush.msra.mxu0 %v409
    %762 = vmatpush.msra.mxu0 %v397
    %763 = vmatpush.msra.mxu0 %v385
    %764 = vmatpush.msra.mxu0 %v373
    %765 = vmatpush.msra.mxu0 %v361
    %766 = vmatpush.msra.mxu0 %v349
    %767 = vmatpush.msra.mxu0 %v337
    %768 = vmatpush.msra.mxu0 %v325
    %769 = vmatpush.msra.mxu0 %v313
    %770 = vmatpush.msra.mxu0 %v301
    %771 = vmatpush.msra.mxu0 %v289
    %772 = vmatpush.msra.mxu0 %v277
    %773 = vmatmul.f32.gmra.mxu0 %v494
    %v774 = vpop.f32.mrf.mxu0
    %v775 = vadd.f32 %v755, %v774
    %776 = vdwg.mxu0
    %777 = vmatpush.msra.mxu0 %v266
    %778 = vmatpush.msra.mxu0 %v254
    %779 = vmatpush.msra.mxu0 %v242
    %780 = vmatpush.msra.mxu0 %v230
    %781 = vmatpush.msra.mxu0 %v218
    %782 = vmatpush.msra.mxu0 %v206
    %783 = vmatpush.msra.mxu0 %v194
    %784 = vmatpush.msra.mxu0 %v182
    %785 = vmatpush.msra.mxu0 %v170
    %786 = vmatpush.msra.mxu0 %v158
    %787 = vmatpush.msra.mxu0 %v146
    %788 = vmatpush.msra.mxu0 %v134
    %789 = vmatpush.msra.mxu0 %v122
    %790 = vmatpush.msra.mxu0 %v110
    %791 = vmatpush.msra.mxu0 %v98
    %792 = vmatpush.msra.mxu0 %v86
    %793 = vmatmul.f32.gmra.mxu0 %v493
    %v794 = vpop.f32.mrf.mxu0
    %v795 = vadd.f32 %v474, %v794
    %796 = vdwg.mxu0
    %797 = vmatpush.msra.mxu0 %v458
    %798 = vmatpush.msra.mxu0 %v446
    %799 = vmatpush.msra.mxu0 %v434
    %800 = vmatpush.msra.mxu0 %v422
    %801 = vmatpush.msra.mxu0 %v410
    %802 = vmatpush.msra.mxu0 %v398
    %803 = vmatpush.msra.mxu0 %v386
    %804 = vmatpush.msra.mxu0 %v374
    %805 = vmatpush.msra.mxu0 %v362
    %806 = vmatpush.msra.mxu0 %v350
    %807 = vmatpush.msra.mxu0 %v338
    %808 = vmatpush.msra.mxu0 %v326
    %809 = vmatpush.msra.mxu0 %v314
    %810 = vmatpush.msra.mxu0 %v302
    %811 = vmatpush.msra.mxu0 %v290
    %812 = vmatpush.msra.mxu0 %v278
    %813 = vmatmul.f32.gmra.mxu0 %v494
    %v814 = vpop.f32.mrf.mxu0
    %v815 = vadd.f32 %v795, %v814
    %816 = vdwg.mxu0
    %817 = vmatpush.msra.mxu0 %v267
    %818 = vmatpush.msra.mxu0 %v255
    %819 = vmatpush.msra.mxu0 %v243
    %820 = vmatpush.msra.mxu0 %v231
    %821 = vmatpush.msra.mxu0 %v219
    %822 = vmatpush.msra.mxu0 %v207
    %823 = vmatpush.msra.mxu0 %v195
    %824 = vmatpush.msra.mxu0 %v183
    %825 = vmatpush.msra.mxu0 %v171
    %826 = vmatpush.msra.mxu0 %v159
    %827 = vmatpush.msra.mxu0 %v147
    %828 = vmatpush.msra.mxu0 %v135
    %829 = vmatpush.msra.mxu0 %v123
    %830 = vmatpush.msra.mxu0 %v111
    %831 = vmatpush.msra.mxu0 %v99
    %832 = vmatpush.msra.mxu0 %v87
    %833 = vmatmul.f32.gmra.mxu0 %v493
    %v834 = vpop.f32.mrf.mxu0
    %v835 = vadd.f32 %v475, %v834
    %836 = vdwg.mxu0
    %837 = vmatpush.msra.mxu0 %v459
    %838 = vmatpush.msra.mxu0 %v447
    %839 = vmatpush.msra.mxu0 %v435
    %840 = vmatpush.msra.mxu0 %v423
    %841 = vmatpush.msra.mxu0 %v411
    %842 = vmatpush.msra.mxu0 %v399
    %843 = vmatpush.msra.mxu0 %v387
    %844 = vmatpush.msra.mxu0 %v375
    %845 = vmatpush.msra.mxu0 %v363
    %846 = vmatpush.msra.mxu0 %v351
    %847 = vmatpush.msra.mxu0 %v339
    %848 = vmatpush.msra.mxu0 %v327
    %849 = vmatpush.msra.mxu0 %v315
    %850 = vmatpush.msra.mxu0 %v303
    %851 = vmatpush.msra.mxu0 %v291
    %852 = vmatpush.msra.mxu0 %v279
    %853 = vmatmul.f32.gmra.mxu0 %v494
    %v854 = vpop.f32.mrf.mxu0
    %v855 = vadd.f32 %v835, %v854
    %856 = vdwg.mxu0
    %857 = vmatpush.msra.mxu0 %v268
    %858 = vmatpush.msra.mxu0 %v256
    %859 = vmatpush.msra.mxu0 %v244
    %860 = vmatpush.msra.mxu0 %v232
    %861 = vmatpush.msra.mxu0 %v220
    %862 = vmatpush.msra.mxu0 %v208
    %863 = vmatpush.msra.mxu0 %v196
    %864 = vmatpush.msra.mxu0 %v184
    %865 = vmatpush.msra.mxu0 %v172
    %866 = vmatpush.msra.mxu0 %v160
    %867 = vmatpush.msra.mxu0 %v148
    %868 = vmatpush.msra.mxu0 %v136
    %869 = vmatpush.msra.mxu0 %v124
    %870 = vmatpush.msra.mxu0 %v112
    %871 = vmatpush.msra.mxu0 %v100
    %872 = vmatpush.msra.mxu0 %v88
    %873 = vmatmul.f32.gmra.mxu0 %v493
    %v874 = vpop.f32.mrf.mxu0
    %v875 = vadd.f32 %v476, %v874
    %876 = vdwg.mxu0
    %877 = vmatpush.msra.mxu0 %v460
    %878 = vmatpush.msra.mxu0 %v448
    %879 = vmatpush.msra.mxu0 %v436
    %880 = vmatpush.msra.mxu0 %v424
    %881 = vmatpush.msra.mxu0 %v412
    %882 = vmatpush.msra.mxu0 %v400
    %883 = vmatpush.msra.mxu0 %v388
    %884 = vmatpush.msra.mxu0 %v376
    %885 = vmatpush.msra.mxu0 %v364
    %886 = vmatpush.msra.mxu0 %v352
    %887 = vmatpush.msra.mxu0 %v340
    %888 = vmatpush.msra.mxu0 %v328
    %889 = vmatpush.msra.mxu0 %v316
    %890 = vmatpush.msra.mxu0 %v304
    %891 = vmatpush.msra.mxu0 %v292
    %892 = vmatpush.msra.mxu0 %v280
    %893 = vmatmul.f32.gmra.mxu0 %v494
    %v894 = vpop.f32.mrf.mxu0
    %v895 = vadd.f32 %v875, %v894
    %896 = vdwg.mxu0
    %897 = vmatpush.msra.mxu0 %v269
    %898 = vmatpush.msra.mxu0 %v257
    %899 = vmatpush.msra.mxu0 %v245
    %900 = vmatpush.msra.mxu0 %v233
    %901 = vmatpush.msra.mxu0 %v221
    %902 = vmatpush.msra.mxu0 %v209
    %903 = vmatpush.msra.mxu0 %v197
    %904 = vmatpush.msra.mxu0 %v185
    %905 = vmatpush.msra.mxu0 %v173
    %906 = vmatpush.msra.mxu0 %v161
    %907 = vmatpush.msra.mxu0 %v149
    %908 = vmatpush.msra.mxu0 %v137
    %909 = vmatpush.msra.mxu0 %v125
    %910 = vmatpush.msra.mxu0 %v113
    %911 = vmatpush.msra.mxu0 %v101
    %912 = vmatpush.msra.mxu0 %v89
    %913 = vmatmul.f32.gmra.mxu0 %v493
    %v914 = vpop.f32.mrf.mxu0
    %v915 = vadd.f32 %v477, %v914
    %916 = vdwg.mxu0
    %917 = vmatpush.msra.mxu0 %v461
    %918 = vmatpush.msra.mxu0 %v449
    %919 = vmatpush.msra.mxu0 %v437
    %920 = vmatpush.msra.mxu0 %v425
    %921 = vmatpush.msra.mxu0 %v413
    %922 = vmatpush.msra.mxu0 %v401
    %923 = vmatpush.msra.mxu0 %v389
    %924 = vmatpush.msra.mxu0 %v377
    %925 = vmatpush.msra.mxu0 %v365
    %926 = vmatpush.msra.mxu0 %v353
    %927 = vmatpush.msra.mxu0 %v341
    %928 = vmatpush.msra.mxu0 %v329
    %929 = vmatpush.msra.mxu0 %v317
    %930 = vmatpush.msra.mxu0 %v305
    %931 = vmatpush.msra.mxu0 %v293
    %932 = vmatpush.msra.mxu0 %v281
    %933 = vmatmul.f32.gmra.mxu0 %v494
    %v934 = vpop.f32.mrf.mxu0
    %v935 = vadd.f32 %v915, %v934
    %936 = vdwg.mxu0
    %937 = vmatpush.msra.mxu0 %v270
    %938 = vmatpush.msra.mxu0 %v258
    %939 = vmatpush.msra.mxu0 %v246
    %940 = vmatpush.msra.mxu0 %v234
    %941 = vmatpush.msra.mxu0 %v222
    %942 = vmatpush.msra.mxu0 %v210
    %943 = vmatpush.msra.mxu0 %v198
    %944 = vmatpush.msra.mxu0 %v186
    %945 = vmatpush.msra.mxu0 %v174
    %946 = vmatpush.msra.mxu0 %v162
    %947 = vmatpush.msra.mxu0 %v150
    %948 = vmatpush.msra.mxu0 %v138
    %949 = vmatpush.msra.mxu0 %v126
    %950 = vmatpush.msra.mxu0 %v114
    %951 = vmatpush.msra.mxu0 %v102
    %952 = vmatpush.msra.mxu0 %v90
    %953 = vmatmul.f32.gmra.mxu0 %v493
    %v954 = vpop.f32.mrf.mxu0
    %v955 = vadd.f32 %v478, %v954
    %956 = vdwg.mxu0
    %957 = vmatpush.msra.mxu0 %v462
    %958 = vmatpush.msra.mxu0 %v450
    %959 = vmatpush.msra.mxu0 %v438
    %960 = vmatpush.msra.mxu0 %v426
    %961 = vmatpush.msra.mxu0 %v414
    %962 = vmatpush.msra.mxu0 %v402
    %963 = vmatpush.msra.mxu0 %v390
    %964 = vmatpush.msra.mxu0 %v378
    %965 = vmatpush.msra.mxu0 %v366
    %966 = vmatpush.msra.mxu0 %v354
    %967 = vmatpush.msra.mxu0 %v342
    %968 = vmatpush.msra.mxu0 %v330
    %969 = vmatpush.msra.mxu0 %v318
    %970 = vmatpush.msra.mxu0 %v306
    %971 = vmatpush.msra.mxu0 %v294
    %972 = vmatpush.msra.mxu0 %v282
    %973 = vmatmul.f32.gmra.mxu0 %v494
    %v974 = vpop.f32.mrf.mxu0
    %v975 = vadd.f32 %v955, %v974
    %976 = vdwg.mxu0
    %v989 = vrot.slane %v575, 6
    %v990 = vrot.slane %v615, 4
    %v991 = vrot.slane %v655, 2
    %v992 = vrot.slane %v735, 6
    %v993 = vrot.slane %v775, 4
    %v994 = vrot.slane %v815, 2
    %v995 = vrot.slane %v895, 6
    %v996 = vrot.slane %v935, 4
    %v997 = vrot.slane %v975, 2
    %vm998 = vcmask 1041408
    %v999 = vsel %vm998, %v535, %v989
    %vm1000 = vcmask 1045508
    %v1001 = vsel %vm1000, %v990, %v991
    %vm1002 = vcmask 1043456
    %v1003 = vsel %vm1002, %v999, %v1001
    %v1004 = vsel %vm998, %v695, %v992
    %v1005 = vsel %vm1000, %v993, %v994
    %v1006 = vsel %vm1002, %v1004, %v1005
    %v1007 = vsel %vm998, %v855, %v995
    %v1008 = vsel %vm1000, %v996, %v997
    %v1009 = vsel %vm1002, %v1007, %v1008
    %1013 = vst [vmem:[#allocation8] sm:$0xff] %v1003
    %1014 = vst [vmem:[#allocation8 + $0x8] sm:$0xff] %v1006
    %1015 = vst [vmem:[#allocation8 + $0x10] sm:$0xff] %v1009
    // Predicated region
    $region26: #{tpu_custom_call.1} parent=1 // pred_check
      _
    $region27: #{tpu_custom_call.1} parent=1 // pred_check_branch
      %1017 = sbr.rel (0) target = $region29
    $region28: #{tpu_custom_call.1} parent=1 // pred_region
      %1019 = vsyncadd [#allocation4], 0
      %s1021 = sshll.u32 [#allocation8], 4
      %s1022 = int_to_ptr.vmem [resolvable:$true] %s1021
      %s1023 = sshll.u32 %s3, 4
      %s1024 = int_to_ptr.hbm [resolvable:$true] %s1023
      %1026 = dma.vmem_to_hbm [thread:$0]  %s1022, 384, %s1024, [#allocation4]
    $region29: #{tpu_custom_call.1} parent=1 // pred_fallthru
      _
    // Predicated region
    $region30: #{tpu_custom_call.1} parent=1 // pred_check
      _
    $region31: #{tpu_custom_call.1} parent=1 // pred_check_branch
      %1028 = sbr.rel (0) target = $region33
    $region32: #{tpu_custom_call.1} parent=1 // pred_region
      %1030 = dma.done [#allocation4], 384
    $region33: #{tpu_custom_call.1} parent=1 // pred_fallthru
      _
    %1031 = vsyncpa [#allocation3], 1
    %1032 = vsyncpa [#allocation6], 1
    %1033 = vsyncpa [#allocation4], 1

</llo_original>
